<compile_context>
chip_gen: v6e
topology: v6e:2x2x1
jax: 0.10.0
libtpu: 0.0.40
codegen_flags: <defaults>
</compile_context>

<pallas_src>
import jax
import jax.numpy as jnp
from jax.experimental import pallas as pl
from jax.experimental.pallas import tpu as pltpu

D_IN = 768
DIMS = [768, 256, 128, 64]          # per-block input dims
N_LABELS = 5                        # synthetic NER label count
NEG_SLOPE = 0.01                    # nn.LeakyReLU default
LANE = 128                          # TPU lane width (pad target)


def _leaky_relu_f32(x):
    # Keep elementwise math in f32 (no native bf16 VPU on v5e).
    return jnp.where(x > 0, x, NEG_SLOPE * x)


def _head_kernel(x_ref,
                 w1_ref, b1_ref,
                 w2_ref, b2_ref,
                 w3_ref, b3_ref,
                 w4_ref, b4_ref,
                 o_ref):
    """One TM-row tile of the MLP head. Weights/biases are VMEM-resident."""

    def block(h_bf16, w_ref, b_ref):
        # MXU matmul in bf16 with f32 accumulation, (1, d_out) bias broadcast,
        # LeakyReLU in f32.
        y = jnp.dot(h_bf16, w_ref[...], preferred_element_type=jnp.float32)
        return _leaky_relu_f32(y + b_ref[...])

    # f32 activation tile comes straight from HBM; cast to bf16 in VMEM (no
    # separate wrapper-side cast pass over the activations).
    h = x_ref[...].astype(jnp.bfloat16)                   # (TM, 768)
    h = block(h, w1_ref, b1_ref).astype(jnp.bfloat16)     # (TM, 256)
    h = block(h, w2_ref, b2_ref).astype(jnp.bfloat16)     # (TM, 128)
    h = block(h, w3_ref, b3_ref).astype(jnp.bfloat16)     # (TM, 128) lanes 64..127 == 0
    y = block(h, w4_ref, b4_ref)                          # (TM, 128) f32, lane-dense
    o_ref[...] = y.astype(o_ref.dtype)                    # bf16 store (half the bytes)


def _round_up(n, m):
    return ((n + m - 1) // m) * m


def _choose_tm(n_words, tm_req):
    """Row tile: big (amortize per-step overhead), multiple of 16 (bf16 sublane
    packing for the output block), and >= 2 grid tiles when rows allow it so the
    'parallel' axis actually shards across v7x's two TensorCores."""
    if n_words <= 32:
        # Single full-array block (block_shape == array dims is always legal).
        return n_words
    half = _round_up(pl.cdiv(n_words, 2), 16)
    return min(_round_up(tm_req, 16), half)


def _prepare_params(params):
    """Cast frozen weights to bf16; zero-pad layer 3 out / layer 4 in+out to 128
    lanes (mathematical no-op: padded activations are LeakyReLU(0+0)=0 and the
    padded W4 rows are zero)."""
    (w1, b1), (w2, b2), (w3, b3), (w4, b4) = params
    n_labels = w4.shape[1]
    w3p = jnp.pad(w3, ((0, 0), (0, LANE - w3.shape[1])))
    b3p = jnp.pad(b3, (0, LANE - b3.shape[0]))
    w4p = jnp.pad(w4, ((0, LANE - w4.shape[0]), (0, LANE - w4.shape[1])))
    b4p = jnp.pad(b4, (0, LANE - b4.shape[0]))
    prepped = []
    for w, b in [(w1, b1), (w2, b2), (w3p, b3p), (w4p, b4p)]:
        prepped.append((w.astype(jnp.bfloat16),
                        b.reshape(1, -1).astype(jnp.float32)))
    return prepped, n_labels


def bert_lstm_head(word_embs, params, *, tm=2048):
    """word_embs: (n_words, 768) f32.  params: list of 4 (W, b), W is (d_in, d_out)."""
    n_words, d_in = word_embs.shape
    prepped, n_labels = _prepare_params(params)
    assert n_labels <= LANE

    tm_eff = _choose_tm(n_words, tm)
    n_tiles = pl.cdiv(n_words, tm_eff)

    flat_args = [word_embs]                     # f32, cast to bf16 inside the kernel
    in_specs = [pl.BlockSpec((tm_eff, d_in), lambda i: (i, 0))]
    for w, b in prepped:
        flat_args += [w, b]
        # Full-array blocks with constant index_map: stay VMEM-resident across tiles.
        in_specs += [pl.BlockSpec(w.shape, lambda i: (0, 0)),
                     pl.BlockSpec(b.shape, lambda i: (0, 0))]

    flops = 2 * n_words * sum(int(w.shape[0]) * int(w.shape[1]) for w, _ in prepped)
    bytes_accessed = (n_words * d_in * 4                       # f32 activation read
                      + n_words * LANE * 2                     # bf16 output write
                      + sum(int(w.size) * 2 + int(b.size) * 4 for w, b in prepped))
    cost = pl.CostEstimate(flops=flops, transcendentals=0,
                           bytes_accessed=bytes_accessed)

    out = pl.pallas_call(
        _head_kernel,
        out_shape=jax.ShapeDtypeStruct((n_words, LANE), jnp.bfloat16),
        grid=(n_tiles,),
        in_specs=in_specs,
        out_specs=pl.BlockSpec((tm_eff, LANE), lambda i: (i, 0)),
        compiler_params=pltpu.CompilerParams(
            dimension_semantics=("parallel",),
            vmem_limit_bytes=48 * 1024 * 1024),
        cost_estimate=cost,
    )(*flat_args)

    # Drop lane padding; cast the tiny sliced result back to f32 for downstream.
    return out[:, :n_labels].astype(jnp.float32)


def init_params(key, n_labels=N_LABELS):
    """PyTorch-style Linear init: U(-1/sqrt(fan_in), 1/sqrt(fan_in))."""
    dims_out = DIMS[1:] + [n_labels]
    params = []
    for d_in, d_out in zip(DIMS, dims_out):
        key, kw, kb = jax.random.split(key, 3)
        bound = 1.0 / (d_in ** 0.5)
        w = jax.random.uniform(kw, (d_in, d_out), jnp.float32, -bound, bound)
        b = jax.random.uniform(kb, (d_out,), jnp.float32, -bound, bound)
        params.append((w, b))
    return params


def reference_head(word_embs, params):
    """Precision-matched reference: bf16 inputs/weights, f32 accumulate + elementwise."""
    h = word_embs.astype(jnp.bfloat16)
    y = None
    for w, b in params:
        y = _leaky_relu_f32(
            jnp.dot(h, w.astype(jnp.bfloat16), preferred_element_type=jnp.float32)
            + b.astype(jnp.float32))
        h = y.astype(jnp.bfloat16)
    return y


if __name__ == "__main__":
    key = jax.random.PRNGKey(0)
    key, k_emb1, k_emb2 = jax.random.split(key, 3)
    params = init_params(key, n_labels=N_LABELS)

    # Case 1: small single sentence (one full-array block).
    n_words = 8
    word_embs = jax.random.normal(k_emb1, (n_words, D_IN), jnp.float32)
    pred = jax.block_until_ready(bert_lstm_head(word_embs, params))
    ref = reference_head(word_embs, params)
    assert pred.shape == (n_words, N_LABELS)
    assert jnp.allclose(pred, ref, atol=2e-2, rtol=2e-2), "mismatch vs reference (n=8)"

    # Case 2: ragged row count exercising the multi-tile path + partial last block.
    n_words2 = 100
    word_embs2 = jax.random.normal(k_emb2, (n_words2, D_IN), jnp.float32)
    pred2 = jax.block_until_ready(bert_lstm_head(word_embs2, params))
    ref2 = reference_head(word_embs2, params)
    assert pred2.shape == (n_words2, N_LABELS)
    assert jnp.allclose(pred2, ref2, atol=2e-2, rtol=2e-2), "mismatch vs reference (n=100)"

    print("KERNEL_OK")
</pallas_src>

<mosaic_0001>
module attributes {stable_mosaic.version = 11 : i64} {
  func.func @_head_kernel(%arg0: i32, %arg1: memref<8x768xf32, #tpu.memory_space<vmem>>, %arg2: memref<768x256xbf16, #tpu.memory_space<vmem>>, %arg3: memref<1x256xf32, #tpu.memory_space<vmem>>, %arg4: memref<256x128xbf16, #tpu.memory_space<vmem>>, %arg5: memref<1x128xf32, #tpu.memory_space<vmem>>, %arg6: memref<128x128xbf16, #tpu.memory_space<vmem>>, %arg7: memref<1x128xf32, #tpu.memory_space<vmem>>, %arg8: memref<128x128xbf16, #tpu.memory_space<vmem>>, %arg9: memref<1x128xf32, #tpu.memory_space<vmem>>, %arg10: memref<8x128xbf16, #tpu.memory_space<vmem>>) attributes {dimension_semantics = [#tpu.dimension_semantics<parallel>], iteration_bounds = array<i64: 1>, scalar_prefetch = 0 : i64, scratch_operands = 0 : i64, tpu.core_type = #tpu.core_type<tc>, window_params = [{transform_indices = @transform_0, window_bounds = array<i64: 8, 768>}, {pipeline_mode = #tpu.pipeline_mode<synchronous>, transform_indices = @transform_1, window_bounds = array<i64: 768, 256>}, {pipeline_mode = #tpu.pipeline_mode<synchronous>, transform_indices = @transform_2, window_bounds = array<i64: 1, 256>}, {pipeline_mode = #tpu.pipeline_mode<synchronous>, transform_indices = @transform_3, window_bounds = array<i64: 256, 128>}, {pipeline_mode = #tpu.pipeline_mode<synchronous>, transform_indices = @transform_4, window_bounds = array<i64: 1, 128>}, {pipeline_mode = #tpu.pipeline_mode<synchronous>, transform_indices = @transform_5, window_bounds = array<i64: 128, 128>}, {pipeline_mode = #tpu.pipeline_mode<synchronous>, transform_indices = @transform_6, window_bounds = array<i64: 1, 128>}, {pipeline_mode = #tpu.pipeline_mode<synchronous>, transform_indices = @transform_7, window_bounds = array<i64: 128, 128>}, {pipeline_mode = #tpu.pipeline_mode<synchronous>, transform_indices = @transform_8, window_bounds = array<i64: 1, 128>}, {transform_indices = @transform_9, window_bounds = array<i64: 8, 128>}]} {
    %c0 = arith.constant 0 : index
    %c0_0 = arith.constant 0 : index
    %0 = vector.load %arg1[%c0, %c0_0] : memref<8x768xf32, #tpu.memory_space<vmem>>, vector<8x768xf32>
    %1 = arith.truncf %0 : vector<8x768xf32> to vector<8x768xbf16>
    %c0_1 = arith.constant 0 : index
    %c0_2 = arith.constant 0 : index
    %2 = vector.load %arg2[%c0_1, %c0_2] : memref<768x256xbf16, #tpu.memory_space<vmem>>, vector<768x256xbf16>
    %cst = arith.constant dense<0.000000e+00> : vector<8x256xf32>
    %3 = tpu.matmul %1, %2, %cst {dimension_numbers = #tpu.dot_dimension_numbers<[1], [0], [0], [1], [0, 0, 1, 1], [], []>} : vector<8x768xbf16>, vector<768x256xbf16>, vector<8x256xf32> -> vector<8x256xf32>
    %c0_3 = arith.constant 0 : index
    %c0_4 = arith.constant 0 : index
    %4 = vector.load %arg3[%c0_3, %c0_4] : memref<1x256xf32, #tpu.memory_space<vmem>>, vector<1x256xf32>
    %5 = vector.broadcast %4 : vector<1x256xf32> to vector<8x256xf32>
    %6 = arith.addf %3, %5 : vector<8x256xf32>
    %cst_5 = arith.constant 0.000000e+00 : f32
    %7 = vector.broadcast %cst_5 : f32 to vector<8x256xf32>
    %8 = arith.cmpf ogt, %6, %7 : vector<8x256xf32>
    %cst_6 = arith.constant 0.00999999977 : f32
    %9 = vector.broadcast %cst_6 : f32 to vector<8x256xf32>
    %10 = arith.mulf %9, %6 : vector<8x256xf32>
    %11 = arith.select %8, %6, %10 : vector<8x256xi1>, vector<8x256xf32>
    %12 = arith.truncf %11 : vector<8x256xf32> to vector<8x256xbf16>
    %c0_7 = arith.constant 0 : index
    %c0_8 = arith.constant 0 : index
    %13 = vector.load %arg4[%c0_7, %c0_8] : memref<256x128xbf16, #tpu.memory_space<vmem>>, vector<256x128xbf16>
    %cst_9 = arith.constant dense<0.000000e+00> : vector<8x128xf32>
    %14 = tpu.matmul %12, %13, %cst_9 {dimension_numbers = #tpu.dot_dimension_numbers<[1], [0], [0], [1], [0, 0, 1, 1], [], []>} : vector<8x256xbf16>, vector<256x128xbf16>, vector<8x128xf32> -> vector<8x128xf32>
    %c0_10 = arith.constant 0 : index
    %c0_11 = arith.constant 0 : index
    %15 = vector.load %arg5[%c0_10, %c0_11] : memref<1x128xf32, #tpu.memory_space<vmem>>, vector<1x128xf32>
    %16 = vector.broadcast %15 : vector<1x128xf32> to vector<8x128xf32>
    %17 = arith.addf %14, %16 : vector<8x128xf32>
    %cst_12 = arith.constant 0.000000e+00 : f32
    %18 = vector.broadcast %cst_12 : f32 to vector<8x128xf32>
    %19 = arith.cmpf ogt, %17, %18 : vector<8x128xf32>
    %cst_13 = arith.constant 0.00999999977 : f32
    %20 = vector.broadcast %cst_13 : f32 to vector<8x128xf32>
    %21 = arith.mulf %20, %17 : vector<8x128xf32>
    %22 = arith.select %19, %17, %21 : vector<8x128xi1>, vector<8x128xf32>
    %23 = arith.truncf %22 : vector<8x128xf32> to vector<8x128xbf16>
    %c0_14 = arith.constant 0 : index
    %c0_15 = arith.constant 0 : index
    %24 = vector.load %arg6[%c0_14, %c0_15] : memref<128x128xbf16, #tpu.memory_space<vmem>>, vector<128x128xbf16>
    %cst_16 = arith.constant dense<0.000000e+00> : vector<8x128xf32>
    %25 = tpu.matmul %23, %24, %cst_16 {dimension_numbers = #tpu.dot_dimension_numbers<[1], [0], [0], [1], [0, 0, 1, 1], [], []>} : vector<8x128xbf16>, vector<128x128xbf16>, vector<8x128xf32> -> vector<8x128xf32>
    %c0_17 = arith.constant 0 : index
    %c0_18 = arith.constant 0 : index
    %26 = vector.load %arg7[%c0_17, %c0_18] : memref<1x128xf32, #tpu.memory_space<vmem>>, vector<1x128xf32>
    %27 = vector.broadcast %26 : vector<1x128xf32> to vector<8x128xf32>
    %28 = arith.addf %25, %27 : vector<8x128xf32>
    %cst_19 = arith.constant 0.000000e+00 : f32
    %29 = vector.broadcast %cst_19 : f32 to vector<8x128xf32>
    %30 = arith.cmpf ogt, %28, %29 : vector<8x128xf32>
    %cst_20 = arith.constant 0.00999999977 : f32
    %31 = vector.broadcast %cst_20 : f32 to vector<8x128xf32>
    %32 = arith.mulf %31, %28 : vector<8x128xf32>
    %33 = arith.select %30, %28, %32 : vector<8x128xi1>, vector<8x128xf32>
    %34 = arith.truncf %33 : vector<8x128xf32> to vector<8x128xbf16>
    %c0_21 = arith.constant 0 : index
    %c0_22 = arith.constant 0 : index
    %35 = vector.load %arg8[%c0_21, %c0_22] : memref<128x128xbf16, #tpu.memory_space<vmem>>, vector<128x128xbf16>
    %cst_23 = arith.constant dense<0.000000e+00> : vector<8x128xf32>
    %36 = tpu.matmul %34, %35, %cst_23 {dimension_numbers = #tpu.dot_dimension_numbers<[1], [0], [0], [1], [0, 0, 1, 1], [], []>} : vector<8x128xbf16>, vector<128x128xbf16>, vector<8x128xf32> -> vector<8x128xf32>
    %c0_24 = arith.constant 0 : index
    %c0_25 = arith.constant 0 : index
    %37 = vector.load %arg9[%c0_24, %c0_25] : memref<1x128xf32, #tpu.memory_space<vmem>>, vector<1x128xf32>
    %38 = vector.broadcast %37 : vector<1x128xf32> to vector<8x128xf32>
    %39 = arith.addf %36, %38 : vector<8x128xf32>
    %cst_26 = arith.constant 0.000000e+00 : f32
    %40 = vector.broadcast %cst_26 : f32 to vector<8x128xf32>
    %41 = arith.cmpf ogt, %39, %40 : vector<8x128xf32>
    %cst_27 = arith.constant 0.00999999977 : f32
    %42 = vector.broadcast %cst_27 : f32 to vector<8x128xf32>
    %43 = arith.mulf %42, %39 : vector<8x128xf32>
    %44 = arith.select %41, %39, %43 : vector<8x128xi1>, vector<8x128xf32>
    %45 = arith.truncf %44 : vector<8x128xf32> to vector<8x128xbf16>
    %c0_28 = arith.constant 0 : index
    %c0_29 = arith.constant 0 : index
    %46 = vector.load %arg10[%c0_28, %c0_29] : memref<8x128xbf16, #tpu.memory_space<vmem>>, vector<8x128xbf16>
    tpu.vector_store %arg10[%c0_28, %c0_29], %45 {strides = array<i32>} : memref<8x128xbf16, #tpu.memory_space<vmem>>, vector<8x128xbf16>,
    return
  }
  func.func @transform_0(%arg0: i32) -> (i32, i32) {
    %c0_i32 = arith.constant 0 : i32
    %c0_i32_0 = arith.constant 0 : i32
    return %arg0, %c0_i32 : i32, i32
  }
  func.func @transform_1(%arg0: i32) -> (i32, i32) {
    %c0_i32 = arith.constant 0 : i32
    %c0_i32_0 = arith.constant 0 : i32
    %c0_i32_1 = arith.constant 0 : i32
    return %c0_i32, %c0_i32_0 : i32, i32
  }
  func.func @transform_2(%arg0: i32) -> (i32, i32) {
    %c0_i32 = arith.constant 0 : i32
    %c0_i32_0 = arith.constant 0 : i32
    %c0_i32_1 = arith.constant 0 : i32
    return %c0_i32, %c0_i32_0 : i32, i32
  }
  func.func @transform_3(%arg0: i32) -> (i32, i32) {
    %c0_i32 = arith.constant 0 : i32
    %c0_i32_0 = arith.constant 0 : i32
    %c0_i32_1 = arith.constant 0 : i32
    return %c0_i32, %c0_i32_0 : i32, i32
  }
  func.func @transform_4(%arg0: i32) -> (i32, i32) {
    %c0_i32 = arith.constant 0 : i32
    %c0_i32_0 = arith.constant 0 : i32
    %c0_i32_1 = arith.constant 0 : i32
    return %c0_i32, %c0_i32_0 : i32, i32
  }
  func.func @transform_5(%arg0: i32) -> (i32, i32) {
    %c0_i32 = arith.constant 0 : i32
    %c0_i32_0 = arith.constant 0 : i32
    %c0_i32_1 = arith.constant 0 : i32
    return %c0_i32, %c0_i32_0 : i32, i32
  }
  func.func @transform_6(%arg0: i32) -> (i32, i32) {
    %c0_i32 = arith.constant 0 : i32
    %c0_i32_0 = arith.constant 0 : i32
    %c0_i32_1 = arith.constant 0 : i32
    return %c0_i32, %c0_i32_0 : i32, i32
  }
  func.func @transform_7(%arg0: i32) -> (i32, i32) {
    %c0_i32 = arith.constant 0 : i32
    %c0_i32_0 = arith.constant 0 : i32
    %c0_i32_1 = arith.constant 0 : i32
    return %c0_i32, %c0_i32_0 : i32, i32
  }
  func.func @transform_8(%arg0: i32) -> (i32, i32) {
    %c0_i32 = arith.constant 0 : i32
    %c0_i32_0 = arith.constant 0 : i32
    %c0_i32_1 = arith.constant 0 : i32
    return %c0_i32, %c0_i32_0 : i32, i32
  }
  func.func @transform_9(%arg0: i32) -> (i32, i32) {
    %c0_i32 = arith.constant 0 : i32
    %c0_i32_0 = arith.constant 0 : i32
    return %arg0, %c0_i32 : i32, i32
  }
}

</mosaic_0001>

<llo_original>
// kernel: tpu_custom_call.1
$region0: #{tpu_custom_call.1}
  #allocation0 [shape = 'u32[]', space=smem, size = 0x4, offset = 0x4, fixed_abs, tag = 'smem constant byte address 0x4 - core index']
  #allocation1 [shape = 'u32[144,128]{1,0:T(1,128)}', space=vmem, size = 0x12000, scoped, tag = 'internal scratch']
  %s0 = inlined_call_operand.hbm [shape: f32[8,768], index: 0, kind: input, shape index: {}]
  %s1 = inlined_call_operand.hbm [shape: bf16[768,256], index: 1, kind: input, shape index: {}]
  %s2 = inlined_call_operand.vmem [shape: f32[1,256], index: 2, kind: input, shape index: {}]
  %s3 = inlined_call_operand.hbm [shape: bf16[256,128], index: 3, kind: input, shape index: {}]
  %s4 = inlined_call_operand.vmem [shape: f32[1,128], index: 4, kind: input, shape index: {}]
  %s5 = inlined_call_operand.hbm [shape: bf16[128,128], index: 5, kind: input, shape index: {}]
  %s6 = inlined_call_operand.vmem [shape: f32[1,128], index: 6, kind: input, shape index: {}]
  %s7 = inlined_call_operand.hbm [shape: bf16[128,128], index: 7, kind: input, shape index: {}]
  %s8 = inlined_call_operand.vmem [shape: f32[1,128], index: 8, kind: input, shape index: {}]
  %s9 = inlined_call_operand.hbm [shape: bf16[8,128], index: 9, kind: output, shape index: {}]
  %s10 = sld [smem:[#allocation0]]
  $region66: #{tpu_custom_call.1} parent=0
    _
  %s12 = ssub.s32 1, %s10
  %s13 = scalar_select 0, %s12, %s10
  $region1: #{tpu_custom_call.1} parent=0
    #allocation2 [shape = 'u8[24576]{0}', space=vmem, size = 0x6000, scoped, tag = 'input window, operand 0, single buffered']
    #allocation3 [shape = 's32[1]{0}', space=sflag, size = 0x4, scoped, tag = 'scoped memory for tpu_custom_call.1']
    #allocation4 [shape = 's32[1]{0}', space=sflag, size = 0x4, scoped, tag = 'scoped memory for tpu_custom_call.1']
    #allocation5 [shape = 'u8[393216]{0}', space=vmem, size = 0x60000, scoped, tag = 'input window, operand 1, single buffered']
    #allocation6 [shape = 's32[1]{0}', space=sflag, size = 0x4, scoped, tag = 'scoped memory for tpu_custom_call.1']
    #allocation7 [shape = 'u8[65536]{0}', space=vmem, size = 0x10000, scoped, tag = 'input window, operand 3, single buffered']
    #allocation8 [shape = 'u8[32768]{0}', space=vmem, size = 0x8000, scoped, tag = 'input window, operand 5, single buffered']
    #allocation9 [shape = 's32[1]{0}', space=sflag, size = 0x4, scoped, tag = 'scoped memory for tpu_custom_call.1']
    #allocation10 [shape = 'u8[32768]{0}', space=vmem, size = 0x8000, scoped, tag = 'input window, operand 7, single buffered']
    #allocation11 [shape = 'u8[2048]{0}', space=vmem, size = 0x800, scoped, tag = 'output window, operand 0, single buffered']
    %14 = vsyncpa [#allocation3], 0
    %15 = vsyncpa [#allocation6], 0
    %16 = vsyncpa [#allocation9], 0
    %17 = vsyncpa [#allocation4], 0
    // Predicated region
    $region2: #{tpu_custom_call.1} parent=1 // pred_check
      _
    $region3: #{tpu_custom_call.1} parent=1 // pred_check_branch
      %19 = sbr.rel (0) target = $region5
    $region4: #{tpu_custom_call.1} parent=1 // pred_region
      %s21 = ssub.s32 768, 768
      %22 = vsyncadd [#allocation3], %s21
      %s24 = sshll.u32 [#allocation2], 4
      %s25 = int_to_ptr.vmem [resolvable:$true] %s24
      %27 = dma.hbm_to_vmem [thread:$0]  %s0, 768, %s25, [#allocation3]
    $region5: #{tpu_custom_call.1} parent=1 // pred_fallthru
      _
    // Predicated region
    $region6: #{tpu_custom_call.1} parent=1 // pred_check
      _
    $region7: #{tpu_custom_call.1} parent=1 // pred_check_branch
      %29 = sbr.rel (0) target = $region9
    $region8: #{tpu_custom_call.1} parent=1 // pred_region
      %s31 = ssub.s32 12288, 12288
      %32 = vsyncadd [#allocation6], %s31
      %s33 = sshll.u32 [#allocation5], 4
      %s34 = int_to_ptr.vmem [resolvable:$true] %s33
      %39 = dma.hbm_to_vmem [thread:$0]  %s1, 12288, %s34, [#allocation6], 128, 128, 8
    $region9: #{tpu_custom_call.1} parent=1 // pred_fallthru
      _
    // Predicated region
    $region10: #{tpu_custom_call.1} parent=1 // pred_check
      _
    $region11: #{tpu_custom_call.1} parent=1 // pred_check_branch
      %41 = sbr.rel (0) target = $region13
    $region12: #{tpu_custom_call.1} parent=1 // pred_region
      _
    $region13: #{tpu_custom_call.1} parent=1 // pred_fallthru
      _
    // Predicated region
    $region14: #{tpu_custom_call.1} parent=1 // pred_check
      _
    $region15: #{tpu_custom_call.1} parent=1 // pred_check_branch
      %43 = sbr.rel (0) target = $region17
    $region16: #{tpu_custom_call.1} parent=1 // pred_region
      %s45 = ssub.s32 2048, 2048
      %46 = vsyncadd [#allocation6], %s45
      %s47 = sshll.u32 [#allocation7], 4
      %s48 = int_to_ptr.vmem [resolvable:$true] %s47
      %53 = dma.hbm_to_vmem [thread:$0]  %s3, 2048, %s48, [#allocation6], 64, 64, 4
    $region17: #{tpu_custom_call.1} parent=1 // pred_fallthru
      _
    // Predicated region
    $region18: #{tpu_custom_call.1} parent=1 // pred_check
      _
    $region19: #{tpu_custom_call.1} parent=1 // pred_check_branch
      %55 = sbr.rel (0) target = $region21
    $region20: #{tpu_custom_call.1} parent=1 // pred_region
      _
    $region21: #{tpu_custom_call.1} parent=1 // pred_fallthru
      _
    // Predicated region
    $region22: #{tpu_custom_call.1} parent=1 // pred_check
      _
    $region23: #{tpu_custom_call.1} parent=1 // pred_check_branch
      %57 = sbr.rel (0) target = $region25
    $region24: #{tpu_custom_call.1} parent=1 // pred_region
      %s59 = ssub.s32 1024, 1024
      %60 = vsyncadd [#allocation9], %s59
      %s61 = sshll.u32 [#allocation8], 4
      %s62 = int_to_ptr.vmem [resolvable:$true] %s61
      %67 = dma.hbm_to_vmem [thread:$0]  %s5, 1024, %s62, [#allocation9], 64, 64, 4
    $region25: #{tpu_custom_call.1} parent=1 // pred_fallthru
      _
    // Predicated region
    $region26: #{tpu_custom_call.1} parent=1 // pred_check
      _
    $region27: #{tpu_custom_call.1} parent=1 // pred_check_branch
      %69 = sbr.rel (0) target = $region29
    $region28: #{tpu_custom_call.1} parent=1 // pred_region
      _
    $region29: #{tpu_custom_call.1} parent=1 // pred_fallthru
      _
    // Predicated region
    $region30: #{tpu_custom_call.1} parent=1 // pred_check
      _
    $region31: #{tpu_custom_call.1} parent=1 // pred_check_branch
      %71 = sbr.rel (0) target = $region33
    $region32: #{tpu_custom_call.1} parent=1 // pred_region
      %s73 = ssub.s32 1024, 1024
      %74 = vsyncadd [#allocation9], %s73
      %s75 = sshll.u32 [#allocation10], 4
      %s76 = int_to_ptr.vmem [resolvable:$true] %s75
      %81 = dma.hbm_to_vmem [thread:$0]  %s7, 1024, %s76, [#allocation9], 64, 64, 4
    $region33: #{tpu_custom_call.1} parent=1 // pred_fallthru
      _
    // Predicated region
    $region34: #{tpu_custom_call.1} parent=1 // pred_check
      _
    $region35: #{tpu_custom_call.1} parent=1 // pred_check_branch
      %83 = sbr.rel (0) target = $region37
    $region36: #{tpu_custom_call.1} parent=1 // pred_region
      _
    $region37: #{tpu_custom_call.1} parent=1 // pred_fallthru
      _
    // Predicated region
    $region38: #{tpu_custom_call.1} parent=1 // pred_check
      _
    $region39: #{tpu_custom_call.1} parent=1 // pred_check_branch
      %85 = sbr.rel (0) target = $region41
    $region40: #{tpu_custom_call.1} parent=1 // pred_region
      %86 = dma.done [#allocation3], 768
    $region41: #{tpu_custom_call.1} parent=1 // pred_fallthru
      _
    // Predicated region
    $region42: #{tpu_custom_call.1} parent=1 // pred_check
      _
    $region43: #{tpu_custom_call.1} parent=1 // pred_check_branch
      %88 = sbr.rel (0) target = $region45
    $region44: #{tpu_custom_call.1} parent=1 // pred_region
      %89 = dma.done [#allocation6], 12288
    $region45: #{tpu_custom_call.1} parent=1 // pred_fallthru
      _
    // Predicated region
    $region46: #{tpu_custom_call.1} parent=1 // pred_check
      _
    $region47: #{tpu_custom_call.1} parent=1 // pred_check_branch
      %91 = sbr.rel (0) target = $region49
    $region48: #{tpu_custom_call.1} parent=1 // pred_region
      %92 = dma.done [#allocation6], 2048
    $region49: #{tpu_custom_call.1} parent=1 // pred_fallthru
      _
    // Predicated region
    $region50: #{tpu_custom_call.1} parent=1 // pred_check
      _
    $region51: #{tpu_custom_call.1} parent=1 // pred_check_branch
      %94 = sbr.rel (0) target = $region53
    $region52: #{tpu_custom_call.1} parent=1 // pred_region
      %95 = dma.done [#allocation9], 1024
    $region53: #{tpu_custom_call.1} parent=1 // pred_fallthru
      _
    // Predicated region
    $region54: #{tpu_custom_call.1} parent=1 // pred_check
      _
    $region55: #{tpu_custom_call.1} parent=1 // pred_check_branch
      %97 = sbr.rel (0) target = $region57
    $region56: #{tpu_custom_call.1} parent=1 // pred_region
      %98 = dma.done [#allocation9], 1024
    $region57: #{tpu_custom_call.1} parent=1 // pred_fallthru
      _
    %v100 = vld [vmem:[#allocation2] sm:$0xff]
    %v101 = vld [vmem:[#allocation2 + $0x8] sm:$0xff]
    %v102 = vld [vmem:[#allocation2 + $0x10] sm:$0xff]
    %v103 = vld [vmem:[#allocation2 + $0x18] sm:$0xff]
    %v104 = vld [vmem:[#allocation2 + $0x20] sm:$0xff]
    %v105 = vld [vmem:[#allocation2 + $0x28] sm:$0xff]
    %v106 = vpack.c.bf16 %v100, %v100
    %v107 = vpack.c.bf16 %v101, %v101
    %v108 = vpack.c.bf16 %v102, %v102
    %v109 = vpack.c.bf16 %v103, %v103
    %v110 = vpack.c.bf16 %v104, %v104
    %v111 = vpack.c.bf16 %v105, %v105
    %v112 = vld [vmem:[#allocation5] sm:$0xff]
    %v113 = vld [vmem:[#allocation5 + $0x8] sm:$0xff]
    %v114 = vld [vmem:[#allocation5 + $0x10] sm:$0xff]
    %v115 = vld [vmem:[#allocation5 + $0x18] sm:$0xff]
    %v116 = vld [vmem:[#allocation5 + $0x20] sm:$0xff]
    %v117 = vld [vmem:[#allocation5 + $0x28] sm:$0xff]
    %v118 = vld [vmem:[#allocation5 + $0x30] sm:$0xff]
    %v119 = vld [vmem:[#allocation5 + $0x38] sm:$0xff]
    %v120 = vld [vmem:[#allocation5 + $0x40] sm:$0xff]
    %v121 = vld [vmem:[#allocation5 + $0x48] sm:$0xff]
    %v122 = vld [vmem:[#allocation5 + $0x50] sm:$0xff]
    %v123 = vld [vmem:[#allocation5 + $0x58] sm:$0xff]
    %v124 = vld [vmem:[#allocation5 + $0x60] sm:$0xff]
    %v125 = vld [vmem:[#allocation5 + $0x68] sm:$0xff]
    %v126 = vld [vmem:[#allocation5 + $0x70] sm:$0xff]
    %v127 = vld [vmem:[#allocation5 + $0x78] sm:$0xff]
    %v128 = vld [vmem:[#allocation5 + $0x80] sm:$0xff]
    %v129 = vld [vmem:[#allocation5 + $0x88] sm:$0xff]
    %v130 = vld [vmem:[#allocation5 + $0x90] sm:$0xff]
    %v131 = vld [vmem:[#allocation5 + $0x98] sm:$0xff]
    %v132 = vld [vmem:[#allocation5 + $0xa0] sm:$0xff]
    %v133 = vld [vmem:[#allocation5 + $0xa8] sm:$0xff]
    %v134 = vld [vmem:[#allocation5 + $0xb0] sm:$0xff]
    %v135 = vld [vmem:[#allocation5 + $0xb8] sm:$0xff]
    %v136 = vld [vmem:[#allocation5 + $0xc0] sm:$0xff]
    %v137 = vld [vmem:[#allocation5 + $0xc8] sm:$0xff]
    %v138 = vld [vmem:[#allocation5 + $0xd0] sm:$0xff]
    %v139 = vld [vmem:[#allocation5 + $0xd8] sm:$0xff]
    %v140 = vld [vmem:[#allocation5 + $0xe0] sm:$0xff]
    %v141 = vld [vmem:[#allocation5 + $0xe8] sm:$0xff]
    %v142 = vld [vmem:[#allocation5 + $0xf0] sm:$0xff]
    %v143 = vld [vmem:[#allocation5 + $0xf8] sm:$0xff]
    %v144 = vld [vmem:[#allocation5 + $0x100] sm:$0xff]
    %v145 = vld [vmem:[#allocation5 + $0x108] sm:$0xff]
    %v146 = vld [vmem:[#allocation5 + $0x110] sm:$0xff]
    %v147 = vld [vmem:[#allocation5 + $0x118] sm:$0xff]
    %v148 = vld [vmem:[#allocation5 + $0x120] sm:$0xff]
    %v149 = vld [vmem:[#allocation5 + $0x128] sm:$0xff]
    %v150 = vld [vmem:[#allocation5 + $0x130] sm:$0xff]
    %v151 = vld [vmem:[#allocation5 + $0x138] sm:$0xff]
    %v152 = vld [vmem:[#allocation5 + $0x140] sm:$0xff]
    %v153 = vld [vmem:[#allocation5 + $0x148] sm:$0xff]
    %v154 = vld [vmem:[#allocation5 + $0x150] sm:$0xff]
    %v155 = vld [vmem:[#allocation5 + $0x158] sm:$0xff]
    %v156 = vld [vmem:[#allocation5 + $0x160] sm:$0xff]
    %v157 = vld [vmem:[#allocation5 + $0x168] sm:$0xff]
    %v158 = vld [vmem:[#allocation5 + $0x170] sm:$0xff]
    %v159 = vld [vmem:[#allocation5 + $0x178] sm:$0xff]
    %v160 = vld [vmem:[#allocation5 + $0x180] sm:$0xff]
    %v161 = vld [vmem:[#allocation5 + $0x188] sm:$0xff]
    %v162 = vld [vmem:[#allocation5 + $0x190] sm:$0xff]
    %v163 = vld [vmem:[#allocation5 + $0x198] sm:$0xff]
    %v164 = vld [vmem:[#allocation5 + $0x1a0] sm:$0xff]
    %v165 = vld [vmem:[#allocation5 + $0x1a8] sm:$0xff]
    %v166 = vld [vmem:[#allocation5 + $0x1b0] sm:$0xff]
    %v167 = vld [vmem:[#allocation5 + $0x1b8] sm:$0xff]
    %v168 = vld [vmem:[#allocation5 + $0x1c0] sm:$0xff]
    %v169 = vld [vmem:[#allocation5 + $0x1c8] sm:$0xff]
    %v170 = vld [vmem:[#allocation5 + $0x1d0] sm:$0xff]
    %v171 = vld [vmem:[#allocation5 + $0x1d8] sm:$0xff]
    %v172 = vld [vmem:[#allocation5 + $0x1e0] sm:$0xff]
    %v173 = vld [vmem:[#allocation5 + $0x1e8] sm:$0xff]
    %v174 = vld [vmem:[#allocation5 + $0x1f0] sm:$0xff]
    %v175 = vld [vmem:[#allocation5 + $0x1f8] sm:$0xff]
    %v176 = vld [vmem:[#allocation5 + $0x200] sm:$0xff]
    %v177 = vld [vmem:[#allocation5 + $0x208] sm:$0xff]
    %v178 = vld [vmem:[#allocation5 + $0x210] sm:$0xff]
    %v179 = vld [vmem:[#allocation5 + $0x218] sm:$0xff]
    %v180 = vld [vmem:[#allocation5 + $0x220] sm:$0xff]
    %v181 = vld [vmem:[#allocation5 + $0x228] sm:$0xff]
    %v182 = vld [vmem:[#allocation5 + $0x230] sm:$0xff]
    %v183 = vld [vmem:[#allocation5 + $0x238] sm:$0xff]
    %v184 = vld [vmem:[#allocation5 + $0x240] sm:$0xff]
    %v185 = vld [vmem:[#allocation5 + $0x248] sm:$0xff]
    %v186 = vld [vmem:[#allocation5 + $0x250] sm:$0xff]
    %v187 = vld [vmem:[#allocation5 + $0x258] sm:$0xff]
    %v188 = vld [vmem:[#allocation5 + $0x260] sm:$0xff]
    %v189 = vld [vmem:[#allocation5 + $0x268] sm:$0xff]
    %v190 = vld [vmem:[#allocation5 + $0x270] sm:$0xff]
    %v191 = vld [vmem:[#allocation5 + $0x278] sm:$0xff]
    %v192 = vld [vmem:[#allocation5 + $0x280] sm:$0xff]
    %v193 = vld [vmem:[#allocation5 + $0x288] sm:$0xff]
    %v194 = vld [vmem:[#allocation5 + $0x290] sm:$0xff]
    %v195 = vld [vmem:[#allocation5 + $0x298] sm:$0xff]
    %v196 = vld [vmem:[#allocation5 + $0x2a0] sm:$0xff]
    %v197 = vld [vmem:[#allocation5 + $0x2a8] sm:$0xff]
    %v198 = vld [vmem:[#allocation5 + $0x2b0] sm:$0xff]
    %v199 = vld [vmem:[#allocation5 + $0x2b8] sm:$0xff]
    %v200 = vld [vmem:[#allocation5 + $0x2c0] sm:$0xff]
    %v201 = vld [vmem:[#allocation5 + $0x2c8] sm:$0xff]
    %v202 = vld [vmem:[#allocation5 + $0x2d0] sm:$0xff]
    %v203 = vld [vmem:[#allocation5 + $0x2d8] sm:$0xff]
    %v204 = vld [vmem:[#allocation5 + $0x2e0] sm:$0xff]
    %v205 = vld [vmem:[#allocation5 + $0x2e8] sm:$0xff]
    %v206 = vld [vmem:[#allocation5 + $0x2f0] sm:$0xff]
    %v207 = vld [vmem:[#allocation5 + $0x2f8] sm:$0xff]
    %v208 = vld [vmem:[%s2] sm:$0x3]
    %v210 = vlaneseq
    %v211 = vshrl.u32 %v210, 7
    %v212 = vsub.s32 0, %v211
    %v213 = vrot.slane %v208, %v212
    %v214 = vlaneseq
    %v215 = vshrl.u32 %v214, 7
    %v216 = vsub.s32 1, %v215
    %v217 = vrot.slane %v208, %v216
    %v316 = vunpack.c.l.b16 %v112
    %v317 = vunpack.c.h.b16 %v112
    %v318 = vunpack.c.l.b16 %v113
    %v319 = vunpack.c.h.b16 %v113
    %v320 = vunpack.c.l.b16 %v114
    %v321 = vunpack.c.h.b16 %v114
    %v322 = vunpack.c.l.b16 %v115
    %v323 = vunpack.c.h.b16 %v115
    %v324 = vunpack.c.l.b16 %v116
    %v325 = vunpack.c.h.b16 %v116
    %v326 = vunpack.c.l.b16 %v117
    %v327 = vunpack.c.h.b16 %v117
    %v328 = vunpack.c.l.b16 %v118
    %v329 = vunpack.c.h.b16 %v118
    %v330 = vunpack.c.l.b16 %v119
    %v331 = vunpack.c.h.b16 %v119
    %v332 = vunpack.c.l.b16 %v120
    %v333 = vunpack.c.h.b16 %v120
    %v334 = vunpack.c.l.b16 %v121
    %v335 = vunpack.c.h.b16 %v121
    %v336 = vunpack.c.l.b16 %v122
    %v337 = vunpack.c.h.b16 %v122
    %v338 = vunpack.c.l.b16 %v123
    %v339 = vunpack.c.h.b16 %v123
    %v340 = vunpack.c.l.b16 %v124
    %v341 = vunpack.c.h.b16 %v124
    %v342 = vunpack.c.l.b16 %v125
    %v343 = vunpack.c.h.b16 %v125
    %v344 = vunpack.c.l.b16 %v126
    %v345 = vunpack.c.h.b16 %v126
    %v346 = vunpack.c.l.b16 %v127
    %v347 = vunpack.c.h.b16 %v127
    %v348 = vunpack.c.l.b16 %v128
    %v349 = vunpack.c.h.b16 %v128
    %v350 = vunpack.c.l.b16 %v129
    %v351 = vunpack.c.h.b16 %v129
    %v352 = vunpack.c.l.b16 %v130
    %v353 = vunpack.c.h.b16 %v130
    %v354 = vunpack.c.l.b16 %v131
    %v355 = vunpack.c.h.b16 %v131
    %v356 = vunpack.c.l.b16 %v132
    %v357 = vunpack.c.h.b16 %v132
    %v358 = vunpack.c.l.b16 %v133
    %v359 = vunpack.c.h.b16 %v133
    %v360 = vunpack.c.l.b16 %v134
    %v361 = vunpack.c.h.b16 %v134
    %v362 = vunpack.c.l.b16 %v135
    %v363 = vunpack.c.h.b16 %v135
    %v364 = vunpack.c.l.b16 %v136
    %v365 = vunpack.c.h.b16 %v136
    %v366 = vunpack.c.l.b16 %v137
    %v367 = vunpack.c.h.b16 %v137
    %v368 = vunpack.c.l.b16 %v138
    %v369 = vunpack.c.h.b16 %v138
    %v370 = vunpack.c.l.b16 %v139
    %v371 = vunpack.c.h.b16 %v139
    %v372 = vunpack.c.l.b16 %v140
    %v373 = vunpack.c.h.b16 %v140
    %v374 = vunpack.c.l.b16 %v141
    %v375 = vunpack.c.h.b16 %v141
    %v376 = vunpack.c.l.b16 %v142
    %v377 = vunpack.c.h.b16 %v142
    %v378 = vunpack.c.l.b16 %v143
    %v379 = vunpack.c.h.b16 %v143
    %v380 = vunpack.c.l.b16 %v144
    %v381 = vunpack.c.h.b16 %v144
    %v382 = vunpack.c.l.b16 %v145
    %v383 = vunpack.c.h.b16 %v145
    %v384 = vunpack.c.l.b16 %v146
    %v385 = vunpack.c.h.b16 %v146
    %v386 = vunpack.c.l.b16 %v147
    %v387 = vunpack.c.h.b16 %v147
    %v388 = vunpack.c.l.b16 %v148
    %v389 = vunpack.c.h.b16 %v148
    %v390 = vunpack.c.l.b16 %v149
    %v391 = vunpack.c.h.b16 %v149
    %v392 = vunpack.c.l.b16 %v150
    %v393 = vunpack.c.h.b16 %v150
    %v394 = vunpack.c.l.b16 %v151
    %v395 = vunpack.c.h.b16 %v151
    %v396 = vunpack.c.l.b16 %v152
    %v397 = vunpack.c.h.b16 %v152
    %v398 = vunpack.c.l.b16 %v153
    %v399 = vunpack.c.h.b16 %v153
    %v400 = vunpack.c.l.b16 %v154
    %v401 = vunpack.c.h.b16 %v154
    %v402 = vunpack.c.l.b16 %v155
    %v403 = vunpack.c.h.b16 %v155
    %v404 = vunpack.c.l.b16 %v156
    %v405 = vunpack.c.h.b16 %v156
    %v406 = vunpack.c.l.b16 %v157
    %v407 = vunpack.c.h.b16 %v157
    %v408 = vunpack.c.l.b16 %v158
    %v409 = vunpack.c.h.b16 %v158
    %v410 = vunpack.c.l.b16 %v159
    %v411 = vunpack.c.h.b16 %v159
    %v412 = vunpack.c.l.b16 %v160
    %v413 = vunpack.c.h.b16 %v160
    %v414 = vunpack.c.l.b16 %v161
    %v415 = vunpack.c.h.b16 %v161
    %v416 = vunpack.c.l.b16 %v162
    %v417 = vunpack.c.h.b16 %v162
    %v418 = vunpack.c.l.b16 %v163
    %v419 = vunpack.c.h.b16 %v163
    %v420 = vunpack.c.l.b16 %v164
    %v421 = vunpack.c.h.b16 %v164
    %v422 = vunpack.c.l.b16 %v165
    %v423 = vunpack.c.h.b16 %v165
    %v424 = vunpack.c.l.b16 %v166
    %v425 = vunpack.c.h.b16 %v166
    %v426 = vunpack.c.l.b16 %v167
    %v427 = vunpack.c.h.b16 %v167
    %v428 = vunpack.c.l.b16 %v168
    %v429 = vunpack.c.h.b16 %v168
    %v430 = vunpack.c.l.b16 %v169
    %v431 = vunpack.c.h.b16 %v169
    %v432 = vunpack.c.l.b16 %v170
    %v433 = vunpack.c.h.b16 %v170
    %v434 = vunpack.c.l.b16 %v171
    %v435 = vunpack.c.h.b16 %v171
    %v436 = vunpack.c.l.b16 %v172
    %v437 = vunpack.c.h.b16 %v172
    %v438 = vunpack.c.l.b16 %v173
    %v439 = vunpack.c.h.b16 %v173
    %v440 = vunpack.c.l.b16 %v174
    %v441 = vunpack.c.h.b16 %v174
    %v442 = vunpack.c.l.b16 %v175
    %v443 = vunpack.c.h.b16 %v175
    %v444 = vunpack.c.l.b16 %v176
    %v445 = vunpack.c.h.b16 %v176
    %v446 = vunpack.c.l.b16 %v177
    %v447 = vunpack.c.h.b16 %v177
    %v448 = vunpack.c.l.b16 %v178
    %v449 = vunpack.c.h.b16 %v178
    %v450 = vunpack.c.l.b16 %v179
    %v451 = vunpack.c.h.b16 %v179
    %v452 = vunpack.c.l.b16 %v180
    %v453 = vunpack.c.h.b16 %v180
    %v454 = vunpack.c.l.b16 %v181
    %v455 = vunpack.c.h.b16 %v181
    %v456 = vunpack.c.l.b16 %v182
    %v457 = vunpack.c.h.b16 %v182
    %v458 = vunpack.c.l.b16 %v183
    %v459 = vunpack.c.h.b16 %v183
    %v460 = vunpack.c.l.b16 %v184
    %v461 = vunpack.c.h.b16 %v184
    %v462 = vunpack.c.l.b16 %v185
    %v463 = vunpack.c.h.b16 %v185
    %v464 = vunpack.c.l.b16 %v186
    %v465 = vunpack.c.h.b16 %v186
    %v466 = vunpack.c.l.b16 %v187
    %v467 = vunpack.c.h.b16 %v187
    %v468 = vunpack.c.l.b16 %v188
    %v469 = vunpack.c.h.b16 %v188
    %v470 = vunpack.c.l.b16 %v189
    %v471 = vunpack.c.h.b16 %v189
    %v472 = vunpack.c.l.b16 %v190
    %v473 = vunpack.c.h.b16 %v190
    %v474 = vunpack.c.l.b16 %v191
    %v475 = vunpack.c.h.b16 %v191
    %v476 = vunpack.c.l.b16 %v192
    %v477 = vunpack.c.h.b16 %v192
    %v478 = vunpack.c.l.b16 %v193
    %v479 = vunpack.c.h.b16 %v193
    %v480 = vunpack.c.l.b16 %v194
    %v481 = vunpack.c.h.b16 %v194
    %v482 = vunpack.c.l.b16 %v195
    %v483 = vunpack.c.h.b16 %v195
    %v484 = vunpack.c.l.b16 %v196
    %v485 = vunpack.c.h.b16 %v196
    %v486 = vunpack.c.l.b16 %v197
    %v487 = vunpack.c.h.b16 %v197
    %v488 = vunpack.c.l.b16 %v198
    %v489 = vunpack.c.h.b16 %v198
    %v490 = vunpack.c.l.b16 %v199
    %v491 = vunpack.c.h.b16 %v199
    %v492 = vunpack.c.l.b16 %v200
    %v493 = vunpack.c.h.b16 %v200
    %v494 = vunpack.c.l.b16 %v201
    %v495 = vunpack.c.h.b16 %v201
    %v496 = vunpack.c.l.b16 %v202
    %v497 = vunpack.c.h.b16 %v202
    %v498 = vunpack.c.l.b16 %v203
    %v499 = vunpack.c.h.b16 %v203
    %v500 = vunpack.c.l.b16 %v204
    %v501 = vunpack.c.h.b16 %v204
    %v502 = vunpack.c.l.b16 %v205
    %v503 = vunpack.c.h.b16 %v205
    %v504 = vunpack.c.l.b16 %v206
    %v505 = vunpack.c.h.b16 %v206
    %v506 = vunpack.c.l.b16 %v207
    %v507 = vunpack.c.h.b16 %v207
    %v508 = vpack.c.b16 %v318, %v316
    %v509 = vpack.c.b16 %v319, %v317
    %v510 = vpack.c.b16 %v322, %v320
    %v511 = vpack.c.b16 %v323, %v321
    %v512 = vpack.c.b16 %v326, %v324
    %v513 = vpack.c.b16 %v327, %v325
    %v514 = vpack.c.b16 %v330, %v328
    %v515 = vpack.c.b16 %v331, %v329
    %v516 = vpack.c.b16 %v334, %v332
    %v517 = vpack.c.b16 %v335, %v333
    %v518 = vpack.c.b16 %v338, %v336
    %v519 = vpack.c.b16 %v339, %v337
    %v520 = vpack.c.b16 %v342, %v340
    %v521 = vpack.c.b16 %v343, %v341
    %v522 = vpack.c.b16 %v346, %v344
    %v523 = vpack.c.b16 %v347, %v345
    %v524 = vpack.c.b16 %v350, %v348
    %v525 = vpack.c.b16 %v351, %v349
    %v526 = vpack.c.b16 %v354, %v352
    %v527 = vpack.c.b16 %v355, %v353
    %v528 = vpack.c.b16 %v358, %v356
    %v529 = vpack.c.b16 %v359, %v357
    %v530 = vpack.c.b16 %v362, %v360
    %v531 = vpack.c.b16 %v363, %v361
    %v532 = vpack.c.b16 %v366, %v364
    %v533 = vpack.c.b16 %v367, %v365
    %v534 = vpack.c.b16 %v370, %v368
    %v535 = vpack.c.b16 %v371, %v369
    %v536 = vpack.c.b16 %v374, %v372
    %v537 = vpack.c.b16 %v375, %v373
    %v538 = vpack.c.b16 %v378, %v376
    %v539 = vpack.c.b16 %v379, %v377
    %v540 = vpack.c.b16 %v382, %v380
    %v541 = vpack.c.b16 %v383, %v381
    %v542 = vpack.c.b16 %v386, %v384
    %v543 = vpack.c.b16 %v387, %v385
    %v544 = vpack.c.b16 %v390, %v388
    %v545 = vpack.c.b16 %v391, %v389
    %v546 = vpack.c.b16 %v394, %v392
    %v547 = vpack.c.b16 %v395, %v393
    %v548 = vpack.c.b16 %v398, %v396
    %v549 = vpack.c.b16 %v399, %v397
    %v550 = vpack.c.b16 %v402, %v400
    %v551 = vpack.c.b16 %v403, %v401
    %v552 = vpack.c.b16 %v406, %v404
    %v553 = vpack.c.b16 %v407, %v405
    %v554 = vpack.c.b16 %v410, %v408
    %v555 = vpack.c.b16 %v411, %v409
    %v556 = vpack.c.b16 %v414, %v412
    %v557 = vpack.c.b16 %v415, %v413
    %v558 = vpack.c.b16 %v418, %v416
    %v559 = vpack.c.b16 %v419, %v417
    %v560 = vpack.c.b16 %v422, %v420
    %v561 = vpack.c.b16 %v423, %v421
    %v562 = vpack.c.b16 %v426, %v424
    %v563 = vpack.c.b16 %v427, %v425
    %v564 = vpack.c.b16 %v430, %v428
    %v565 = vpack.c.b16 %v431, %v429
    %v566 = vpack.c.b16 %v434, %v432
    %v567 = vpack.c.b16 %v435, %v433
    %v568 = vpack.c.b16 %v438, %v436
    %v569 = vpack.c.b16 %v439, %v437
    %v570 = vpack.c.b16 %v442, %v440
    %v571 = vpack.c.b16 %v443, %v441
    %v572 = vpack.c.b16 %v446, %v444
    %v573 = vpack.c.b16 %v447, %v445
    %v574 = vpack.c.b16 %v450, %v448
    %v575 = vpack.c.b16 %v451, %v449
    %v576 = vpack.c.b16 %v454, %v452
    %v577 = vpack.c.b16 %v455, %v453
    %v578 = vpack.c.b16 %v458, %v456
    %v579 = vpack.c.b16 %v459, %v457
    %v580 = vpack.c.b16 %v462, %v460
    %v581 = vpack.c.b16 %v463, %v461
    %v582 = vpack.c.b16 %v466, %v464
    %v583 = vpack.c.b16 %v467, %v465
    %v584 = vpack.c.b16 %v470, %v468
    %v585 = vpack.c.b16 %v471, %v469
    %v586 = vpack.c.b16 %v474, %v472
    %v587 = vpack.c.b16 %v475, %v473
    %v588 = vpack.c.b16 %v478, %v476
    %v589 = vpack.c.b16 %v479, %v477
    %v590 = vpack.c.b16 %v482, %v480
    %v591 = vpack.c.b16 %v483, %v481
    %v592 = vpack.c.b16 %v486, %v484
    %v593 = vpack.c.b16 %v487, %v485
    %v594 = vpack.c.b16 %v490, %v488
    %v595 = vpack.c.b16 %v491, %v489
    %v596 = vpack.c.b16 %v494, %v492
    %v597 = vpack.c.b16 %v495, %v493
    %v598 = vpack.c.b16 %v498, %v496
    %v599 = vpack.c.b16 %v499, %v497
    %v600 = vpack.c.b16 %v502, %v500
    %v601 = vpack.c.b16 %v503, %v501
    %v602 = vpack.c.b16 %v506, %v504
    %v603 = vpack.c.b16 %v507, %v505
    %700 = vmatprep.subr.bf16.mxu0 %v523
    %701 = vmatpush1.bf16.msra.mxu0 %v522
    %702 = vmatprep.subr.bf16.mxu0 %v521
    %703 = vmatpush1.bf16.msra.mxu0 %v520
    %704 = vmatprep.subr.bf16.mxu0 %v519
    %705 = vmatpush1.bf16.msra.mxu0 %v518
    %706 = vmatprep.subr.bf16.mxu0 %v517
    %707 = vmatpush1.bf16.msra.mxu0 %v516
    %708 = vmatprep.subr.bf16.mxu0 %v515
    %709 = vmatpush1.bf16.msra.mxu0 %v514
    %710 = vmatprep.subr.bf16.mxu0 %v513
    %711 = vmatpush1.bf16.msra.mxu0 %v512
    %712 = vmatprep.subr.bf16.mxu0 %v511
    %713 = vmatpush1.bf16.msra.mxu0 %v510
    %714 = vmatprep.subr.bf16.mxu0 %v509
    %715 = vmatpush1.bf16.msra.mxu0 %v508
    %716 = vmatprep.subr.bf16.mxu0 %v539
    %717 = vmatpush2.bf16.msra.mxu0 %v538
    %718 = vmatprep.subr.bf16.mxu0 %v537
    %719 = vmatpush2.bf16.msra.mxu0 %v536
    %720 = vmatprep.subr.bf16.mxu0 %v535
    %721 = vmatpush2.bf16.msra.mxu0 %v534
    %722 = vmatprep.subr.bf16.mxu0 %v533
    %723 = vmatpush2.bf16.msra.mxu0 %v532
    %724 = vmatprep.subr.bf16.mxu0 %v531
    %725 = vmatpush2.bf16.msra.mxu0 %v530
    %726 = vmatprep.subr.bf16.mxu0 %v529
    %727 = vmatpush2.bf16.msra.mxu0 %v528
    %728 = vmatprep.subr.bf16.mxu0 %v527
    %729 = vmatpush2.bf16.msra.mxu0 %v526
    %730 = vmatprep.subr.bf16.mxu0 %v525
    %731 = vmatpush2.bf16.msra.mxu0 %v524
    %732 = vmatprep.mubr.bf16.mxu0 %v107
    %733 = vmatmul.mubr.bf16.gmra.mxu0 %v106
    %v734 = vpop.f32.mrf.mxu0
    %v735 = vadd.f32 %v213, %v734
    %v736 = vpop.f32.mrf.mxu0
    %v737 = vadd.f32 %v217, %v736
    %v738 = vpop.f32.mrf.mxu0
    %v739 = vpop.f32.mrf.mxu0
    %740 = vdwg.mxu0
    %741 = vmatprep.subr.bf16.mxu0 %v555
    %742 = vmatpush1.bf16.msra.mxu0 %v554
    %743 = vmatprep.subr.bf16.mxu0 %v553
    %744 = vmatpush1.bf16.msra.mxu0 %v552
    %745 = vmatprep.subr.bf16.mxu0 %v551
    %746 = vmatpush1.bf16.msra.mxu0 %v550
    %747 = vmatprep.subr.bf16.mxu0 %v549
    %748 = vmatpush1.bf16.msra.mxu0 %v548
    %749 = vmatprep.subr.bf16.mxu0 %v547
    %750 = vmatpush1.bf16.msra.mxu0 %v546
    %751 = vmatprep.subr.bf16.mxu0 %v545
    %752 = vmatpush1.bf16.msra.mxu0 %v544
    %753 = vmatprep.subr.bf16.mxu0 %v543
    %754 = vmatpush1.bf16.msra.mxu0 %v542
    %755 = vmatprep.subr.bf16.mxu0 %v541
    %756 = vmatpush1.bf16.msra.mxu0 %v540
    %757 = vmatprep.subr.bf16.mxu0 %v571
    %758 = vmatpush2.bf16.msra.mxu0 %v570
    %759 = vmatprep.subr.bf16.mxu0 %v569
    %760 = vmatpush2.bf16.msra.mxu0 %v568
    %761 = vmatprep.subr.bf16.mxu0 %v567
    %762 = vmatpush2.bf16.msra.mxu0 %v566
    %763 = vmatprep.subr.bf16.mxu0 %v565
    %764 = vmatpush2.bf16.msra.mxu0 %v564
    %765 = vmatprep.subr.bf16.mxu0 %v563
    %766 = vmatpush2.bf16.msra.mxu0 %v562
    %767 = vmatprep.subr.bf16.mxu0 %v561
    %768 = vmatpush2.bf16.msra.mxu0 %v560
    %769 = vmatprep.subr.bf16.mxu0 %v559
    %770 = vmatpush2.bf16.msra.mxu0 %v558
    %771 = vmatprep.subr.bf16.mxu0 %v557
    %772 = vmatpush2.bf16.msra.mxu0 %v556
    %773 = vmatprep.mubr.bf16.mxu0 %v109
    %774 = vmatmul.mubr.bf16.gmra.mxu0 %v108
    %v775 = vpop.f32.mrf.mxu0
    %v776 = vadd.f32 %v735, %v775
    %v777 = vpop.f32.mrf.mxu0
    %v778 = vadd.f32 %v737, %v777
    %v779 = vpop.f32.mrf.mxu0
    %v780 = vpop.f32.mrf.mxu0
    %781 = vdwg.mxu0
    %782 = vmatprep.subr.bf16.mxu0 %v587
    %783 = vmatpush1.bf16.msra.mxu0 %v586
    %784 = vmatprep.subr.bf16.mxu0 %v585
    %785 = vmatpush1.bf16.msra.mxu0 %v584
    %786 = vmatprep.subr.bf16.mxu0 %v583
    %787 = vmatpush1.bf16.msra.mxu0 %v582
    %788 = vmatprep.subr.bf16.mxu0 %v581
    %789 = vmatpush1.bf16.msra.mxu0 %v580
    %790 = vmatprep.subr.bf16.mxu0 %v579
    %791 = vmatpush1.bf16.msra.mxu0 %v578
    %792 = vmatprep.subr.bf16.mxu0 %v577
    %793 = vmatpush1.bf16.msra.mxu0 %v576
    %794 = vmatprep.subr.bf16.mxu0 %v575
    %795 = vmatpush1.bf16.msra.mxu0 %v574
    %796 = vmatprep.subr.bf16.mxu0 %v573
    %797 = vmatpush1.bf16.msra.mxu0 %v572
    %798 = vmatprep.subr.bf16.mxu0 %v603
    %799 = vmatpush2.bf16.msra.mxu0 %v602
    %800 = vmatprep.subr.bf16.mxu0 %v601
    %801 = vmatpush2.bf16.msra.mxu0 %v600
    %802 = vmatprep.subr.bf16.mxu0 %v599
    %803 = vmatpush2.bf16.msra.mxu0 %v598
    %804 = vmatprep.subr.bf16.mxu0 %v597
    %805 = vmatpush2.bf16.msra.mxu0 %v596
    %806 = vmatprep.subr.bf16.mxu0 %v595
    %807 = vmatpush2.bf16.msra.mxu0 %v594
    %808 = vmatprep.subr.bf16.mxu0 %v593
    %809 = vmatpush2.bf16.msra.mxu0 %v592
    %810 = vmatprep.subr.bf16.mxu0 %v591
    %811 = vmatpush2.bf16.msra.mxu0 %v590
    %812 = vmatprep.subr.bf16.mxu0 %v589
    %813 = vmatpush2.bf16.msra.mxu0 %v588
    %814 = vmatprep.mubr.bf16.mxu0 %v111
    %815 = vmatmul.mubr.bf16.gmra.mxu0 %v110
    %v816 = vpop.f32.mrf.mxu0
    %v817 = vadd.f32 %v776, %v816
    %v818 = vpop.f32.mrf.mxu0
    %v819 = vadd.f32 %v778, %v818
    %v820 = vpop.f32.mrf.mxu0
    %v821 = vpop.f32.mrf.mxu0
    %822 = vdwg.mxu0
    %vm823 = vcmp.gt.f32.partialorder %v817, 0.0
    %vm824 = vcmp.gt.f32.partialorder %v819, 0.0
    %v825 = vmul.f32 %v817, 0.01
    %v826 = vmul.f32 %v819, 0.01
    %v827 = vsel %vm823, %v817, %v825
    %v828 = vsel %vm824, %v819, %v826
    %v829 = vpack.c.bf16 %v827, %v827
    %v830 = vpack.c.bf16 %v828, %v828
    %v831 = vld [vmem:[#allocation7] sm:$0xf]
    %v832 = vld [vmem:[#allocation7 + $0x4] sm:$0xf]
    %v833 = vld [vmem:[#allocation7 + $0x8] sm:$0xf]
    %v834 = vld [vmem:[#allocation7 + $0xc] sm:$0xf]
    %v835 = vld [vmem:[#allocation7 + $0x10] sm:$0xf]
    %v836 = vld [vmem:[#allocation7 + $0x14] sm:$0xf]
    %v837 = vld [vmem:[#allocation7 + $0x18] sm:$0xf]
    %v838 = vld [vmem:[#allocation7 + $0x1c] sm:$0xf]
    %v839 = vld [vmem:[#allocation7 + $0x20] sm:$0xf]
    %v840 = vld [vmem:[#allocation7 + $0x24] sm:$0xf]
    %v841 = vld [vmem:[#allocation7 + $0x28] sm:$0xf]
    %v842 = vld [vmem:[#allocation7 + $0x2c] sm:$0xf]
    %v843 = vld [vmem:[#allocation7 + $0x30] sm:$0xf]
    %v844 = vld [vmem:[#allocation7 + $0x34] sm:$0xf]
    %v845 = vld [vmem:[#allocation7 + $0x38] sm:$0xf]
    %v846 = vld [vmem:[#allocation7 + $0x3c] sm:$0xf]
    %v847 = vld [vmem:[#allocation7 + $0x40] sm:$0xf]
    %v848 = vld [vmem:[#allocation7 + $0x44] sm:$0xf]
    %v849 = vld [vmem:[#allocation7 + $0x48] sm:$0xf]
    %v850 = vld [vmem:[#allocation7 + $0x4c] sm:$0xf]
    %v851 = vld [vmem:[#allocation7 + $0x50] sm:$0xf]
    %v852 = vld [vmem:[#allocation7 + $0x54] sm:$0xf]
    %v853 = vld [vmem:[#allocation7 + $0x58] sm:$0xf]
    %v854 = vld [vmem:[#allocation7 + $0x5c] sm:$0xf]
    %v855 = vld [vmem:[#allocation7 + $0x60] sm:$0xf]
    %v856 = vld [vmem:[#allocation7 + $0x64] sm:$0xf]
    %v857 = vld [vmem:[#allocation7 + $0x68] sm:$0xf]
    %v858 = vld [vmem:[#allocation7 + $0x6c] sm:$0xf]
    %v859 = vld [vmem:[#allocation7 + $0x70] sm:$0xf]
    %v860 = vld [vmem:[#allocation7 + $0x74] sm:$0xf]
    %v861 = vld [vmem:[#allocation7 + $0x78] sm:$0xf]
    %v862 = vld [vmem:[#allocation7 + $0x7c] sm:$0xf]
    %v863 = vld [vmem:[%s4] sm:$0x1]
    %v865 = vlaneseq
    %v866 = vshrl.u32 %v865, 7
    %v867 = vsub.s32 0, %v866
    %v868 = vrot.slane %v863, %v867
    %v902 = vunpack.c.l.b16 %v831
    %v903 = vunpack.c.l.b16 %v832
    %v904 = vunpack.c.l.b16 %v833
    %v905 = vunpack.c.l.b16 %v834
    %v906 = vunpack.c.l.b16 %v835
    %v907 = vunpack.c.l.b16 %v836
    %v908 = vunpack.c.l.b16 %v837
    %v909 = vunpack.c.l.b16 %v838
    %v910 = vunpack.c.l.b16 %v839
    %v911 = vunpack.c.l.b16 %v840
    %v912 = vunpack.c.l.b16 %v841
    %v913 = vunpack.c.l.b16 %v842
    %v914 = vunpack.c.l.b16 %v843
    %v915 = vunpack.c.l.b16 %v844
    %v916 = vunpack.c.l.b16 %v845
    %v917 = vunpack.c.l.b16 %v846
    %v918 = vunpack.c.l.b16 %v847
    %v919 = vunpack.c.l.b16 %v848
    %v920 = vunpack.c.l.b16 %v849
    %v921 = vunpack.c.l.b16 %v850
    %v922 = vunpack.c.l.b16 %v851
    %v923 = vunpack.c.l.b16 %v852
    %v924 = vunpack.c.l.b16 %v853
    %v925 = vunpack.c.l.b16 %v854
    %v926 = vunpack.c.l.b16 %v855
    %v927 = vunpack.c.l.b16 %v856
    %v928 = vunpack.c.l.b16 %v857
    %v929 = vunpack.c.l.b16 %v858
    %v930 = vunpack.c.l.b16 %v859
    %v931 = vunpack.c.l.b16 %v860
    %v932 = vunpack.c.l.b16 %v861
    %v933 = vunpack.c.l.b16 %v862
    %v934 = vpack.c.b16 %v903, %v902
    %v935 = vpack.c.b16 %v905, %v904
    %v936 = vpack.c.b16 %v907, %v906
    %v937 = vpack.c.b16 %v909, %v908
    %v938 = vpack.c.b16 %v911, %v910
    %v939 = vpack.c.b16 %v913, %v912
    %v940 = vpack.c.b16 %v915, %v914
    %v941 = vpack.c.b16 %v917, %v916
    %v942 = vpack.c.b16 %v919, %v918
    %v943 = vpack.c.b16 %v921, %v920
    %v944 = vpack.c.b16 %v923, %v922
    %v945 = vpack.c.b16 %v925, %v924
    %v946 = vpack.c.b16 %v927, %v926
    %v947 = vpack.c.b16 %v929, %v928
    %v948 = vpack.c.b16 %v931, %v930
    %v949 = vpack.c.b16 %v933, %v932
    %966 = vmatprep.subr.bf16.mxu0 0
    %967 = vmatpush1.bf16.msra.mxu0 %v941
    %968 = vmatprep.subr.bf16.mxu0 0
    %969 = vmatpush1.bf16.msra.mxu0 %v940
    %970 = vmatprep.subr.bf16.mxu0 0
    %971 = vmatpush1.bf16.msra.mxu0 %v939
    %972 = vmatprep.subr.bf16.mxu0 0
    %973 = vmatpush1.bf16.msra.mxu0 %v938
    %974 = vmatprep.subr.bf16.mxu0 0
    %975 = vmatpush1.bf16.msra.mxu0 %v937
    %976 = vmatprep.subr.bf16.mxu0 0
    %977 = vmatpush1.bf16.msra.mxu0 %v936
    %978 = vmatprep.subr.bf16.mxu0 0
    %979 = vmatpush1.bf16.msra.mxu0 %v935
    %980 = vmatprep.subr.bf16.mxu0 0
    %981 = vmatpush1.bf16.msra.mxu0 %v934
    %982 = vmatprep.subr.bf16.mxu0 0
    %983 = vmatpush2.bf16.msra.mxu0 %v949
    %984 = vmatprep.subr.bf16.mxu0 0
    %985 = vmatpush2.bf16.msra.mxu0 %v948
    %986 = vmatprep.subr.bf16.mxu0 0
    %987 = vmatpush2.bf16.msra.mxu0 %v947
    %988 = vmatprep.subr.bf16.mxu0 0
    %989 = vmatpush2.bf16.msra.mxu0 %v946
    %990 = vmatprep.subr.bf16.mxu0 0
    %991 = vmatpush2.bf16.msra.mxu0 %v945
    %992 = vmatprep.subr.bf16.mxu0 0
    %993 = vmatpush2.bf16.msra.mxu0 %v944
    %994 = vmatprep.subr.bf16.mxu0 0
    %995 = vmatpush2.bf16.msra.mxu0 %v943
    %996 = vmatprep.subr.bf16.mxu0 0
    %997 = vmatpush2.bf16.msra.mxu0 %v942
    %998 = vmatprep.mubr.bf16.mxu0 %v830
    %999 = vmatmul.mubr.bf16.gmra.mxu0 %v829
    %v1000 = vpop.f32.mrf.mxu0
    %v1001 = vadd.f32 %v868, %v1000
    %v1002 = vpop.f32.mrf.mxu0
    %v1003 = vpop.f32.mrf.mxu0
    %v1004 = vpop.f32.mrf.mxu0
    %1005 = vdwg.mxu0
    %vm1006 = vcmp.gt.f32.partialorder %v1001, 0.0
    %v1007 = vmul.f32 %v1001, 0.01
    %v1008 = vsel %vm1006, %v1001, %v1007
    %v1009 = vpack.c.bf16 %v1008, %v1008
    %v1010 = vld [vmem:[#allocation8] sm:$0xf]
    %v1011 = vld [vmem:[#allocation8 + $0x4] sm:$0xf]
    %v1012 = vld [vmem:[#allocation8 + $0x8] sm:$0xf]
    %v1013 = vld [vmem:[#allocation8 + $0xc] sm:$0xf]
    %v1014 = vld [vmem:[#allocation8 + $0x10] sm:$0xf]
    %v1015 = vld [vmem:[#allocation8 + $0x14] sm:$0xf]
    %v1016 = vld [vmem:[#allocation8 + $0x18] sm:$0xf]
    %v1017 = vld [vmem:[#allocation8 + $0x1c] sm:$0xf]
    %v1018 = vld [vmem:[#allocation8 + $0x20] sm:$0xf]
    %v1019 = vld [vmem:[#allocation8 + $0x24] sm:$0xf]
    %v1020 = vld [vmem:[#allocation8 + $0x28] sm:$0xf]
    %v1021 = vld [vmem:[#allocation8 + $0x2c] sm:$0xf]
    %v1022 = vld [vmem:[#allocation8 + $0x30] sm:$0xf]
    %v1023 = vld [vmem:[#allocation8 + $0x34] sm:$0xf]
    %v1024 = vld [vmem:[#allocation8 + $0x38] sm:$0xf]
    %v1025 = vld [vmem:[#allocation8 + $0x3c] sm:$0xf]
    %v1026 = vld [vmem:[%s6] sm:$0x1]
    %v1028 = vlaneseq
    %v1029 = vshrl.u32 %v1028, 7
    %v1030 = vsub.s32 0, %v1029
    %v1031 = vrot.slane %v1026, %v1030
    %v1049 = vunpack.c.l.b16 %v1010
    %v1050 = vunpack.c.l.b16 %v1011
    %v1051 = vunpack.c.l.b16 %v1012
    %v1052 = vunpack.c.l.b16 %v1013
    %v1053 = vunpack.c.l.b16 %v1014
    %v1054 = vunpack.c.l.b16 %v1015
    %v1055 = vunpack.c.l.b16 %v1016
    %v1056 = vunpack.c.l.b16 %v1017
    %v1057 = vunpack.c.l.b16 %v1018
    %v1058 = vunpack.c.l.b16 %v1019
    %v1059 = vunpack.c.l.b16 %v1020
    %v1060 = vunpack.c.l.b16 %v1021
    %v1061 = vunpack.c.l.b16 %v1022
    %v1062 = vunpack.c.l.b16 %v1023
    %v1063 = vunpack.c.l.b16 %v1024
    %v1064 = vunpack.c.l.b16 %v1025
    %v1065 = vpack.c.b16 %v1050, %v1049
    %v1066 = vpack.c.b16 %v1052, %v1051
    %v1067 = vpack.c.b16 %v1054, %v1053
    %v1068 = vpack.c.b16 %v1056, %v1055
    %v1069 = vpack.c.b16 %v1058, %v1057
    %v1070 = vpack.c.b16 %v1060, %v1059
    %v1071 = vpack.c.b16 %v1062, %v1061
    %v1072 = vpack.c.b16 %v1064, %v1063
    %1081 = vmatprep.subr.bf16.mxu0 0
    %1082 = vmatpush1.bf16.msra.mxu0 %v1072
    %1083 = vmatprep.subr.bf16.mxu0 0
    %1084 = vmatpush1.bf16.msra.mxu0 %v1071
    %1085 = vmatprep.subr.bf16.mxu0 0
    %1086 = vmatpush1.bf16.msra.mxu0 %v1070
    %1087 = vmatprep.subr.bf16.mxu0 0
    %1088 = vmatpush1.bf16.msra.mxu0 %v1069
    %1089 = vmatprep.subr.bf16.mxu0 0
    %1090 = vmatpush1.bf16.msra.mxu0 %v1068
    %1091 = vmatprep.subr.bf16.mxu0 0
    %1092 = vmatpush1.bf16.msra.mxu0 %v1067
    %1093 = vmatprep.subr.bf16.mxu0 0
    %1094 = vmatpush1.bf16.msra.mxu0 %v1066
    %1095 = vmatprep.subr.bf16.mxu0 0
    %1096 = vmatpush1.bf16.msra.mxu0 %v1065
    %1097 = vmatprep.subr.bf16.mxu0 0
    %1098 = vmatpush2.bf16.msra.mxu0 0
    %1099 = vmatprep.subr.bf16.mxu0 0
    %1100 = vmatpush2.bf16.msra.mxu0 0
    %1101 = vmatprep.subr.bf16.mxu0 0
    %1102 = vmatpush2.bf16.msra.mxu0 0
    %1103 = vmatprep.subr.bf16.mxu0 0
    %1104 = vmatpush2.bf16.msra.mxu0 0
    %1105 = vmatprep.subr.bf16.mxu0 0
    %1106 = vmatpush2.bf16.msra.mxu0 0
    %1107 = vmatprep.subr.bf16.mxu0 0
    %1108 = vmatpush2.bf16.msra.mxu0 0
    %1109 = vmatprep.subr.bf16.mxu0 0
    %1110 = vmatpush2.bf16.msra.mxu0 0
    %1111 = vmatprep.subr.bf16.mxu0 0
    %1112 = vmatpush2.bf16.msra.mxu0 0
    %1113 = vmatprep.mubr.bf16.mxu0 0
    %1114 = vmatmul.mubr.bf16.gmra.mxu0 %v1009
    %v1115 = vpop.f32.mrf.mxu0
    %v1116 = vadd.f32 %v1031, %v1115
    %v1117 = vpop.f32.mrf.mxu0
    %v1118 = vpop.f32.mrf.mxu0
    %v1119 = vpop.f32.mrf.mxu0
    %1120 = vdwg.mxu0
    %vm1121 = vcmp.gt.f32.partialorder %v1116, 0.0
    %v1122 = vmul.f32 %v1116, 0.01
    %v1123 = vsel %vm1121, %v1116, %v1122
    %v1124 = vpack.c.bf16 %v1123, %v1123
    %v1125 = vld [vmem:[#allocation10] sm:$0xf]
    %v1126 = vld [vmem:[#allocation10 + $0x4] sm:$0xf]
    %v1127 = vld [vmem:[#allocation10 + $0x8] sm:$0xf]
    %v1128 = vld [vmem:[#allocation10 + $0xc] sm:$0xf]
    %v1129 = vld [vmem:[#allocation10 + $0x10] sm:$0xf]
    %v1130 = vld [vmem:[#allocation10 + $0x14] sm:$0xf]
    %v1131 = vld [vmem:[#allocation10 + $0x18] sm:$0xf]
    %v1132 = vld [vmem:[#allocation10 + $0x1c] sm:$0xf]
    %v1133 = vld [vmem:[#allocation10 + $0x20] sm:$0xf]
    %v1134 = vld [vmem:[#allocation10 + $0x24] sm:$0xf]
    %v1135 = vld [vmem:[#allocation10 + $0x28] sm:$0xf]
    %v1136 = vld [vmem:[#allocation10 + $0x2c] sm:$0xf]
    %v1137 = vld [vmem:[#allocation10 + $0x30] sm:$0xf]
    %v1138 = vld [vmem:[#allocation10 + $0x34] sm:$0xf]
    %v1139 = vld [vmem:[#allocation10 + $0x38] sm:$0xf]
    %v1140 = vld [vmem:[#allocation10 + $0x3c] sm:$0xf]
    %v1141 = vld [vmem:[%s8] sm:$0x1]
    %v1143 = vlaneseq
    %v1144 = vshrl.u32 %v1143, 7
    %v1145 = vsub.s32 0, %v1144
    %v1146 = vrot.slane %v1141, %v1145
    %v1164 = vunpack.c.l.b16 %v1125
    %v1165 = vunpack.c.l.b16 %v1126
    %v1166 = vunpack.c.l.b16 %v1127
    %v1167 = vunpack.c.l.b16 %v1128
    %v1168 = vunpack.c.l.b16 %v1129
    %v1169 = vunpack.c.l.b16 %v1130
    %v1170 = vunpack.c.l.b16 %v1131
    %v1171 = vunpack.c.l.b16 %v1132
    %v1172 = vunpack.c.l.b16 %v1133
    %v1173 = vunpack.c.l.b16 %v1134
    %v1174 = vunpack.c.l.b16 %v1135
    %v1175 = vunpack.c.l.b16 %v1136
    %v1176 = vunpack.c.l.b16 %v1137
    %v1177 = vunpack.c.l.b16 %v1138
    %v1178 = vunpack.c.l.b16 %v1139
    %v1179 = vunpack.c.l.b16 %v1140
    %v1180 = vpack.c.b16 %v1165, %v1164
    %v1181 = vpack.c.b16 %v1167, %v1166
    %v1182 = vpack.c.b16 %v1169, %v1168
    %v1183 = vpack.c.b16 %v1171, %v1170
    %v1184 = vpack.c.b16 %v1173, %v1172
    %v1185 = vpack.c.b16 %v1175, %v1174
    %v1186 = vpack.c.b16 %v1177, %v1176
    %v1187 = vpack.c.b16 %v1179, %v1178
    %1196 = vmatprep.subr.bf16.mxu0 0
    %1197 = vmatpush1.bf16.msra.mxu0 %v1187
    %1198 = vmatprep.subr.bf16.mxu0 0
    %1199 = vmatpush1.bf16.msra.mxu0 %v1186
    %1200 = vmatprep.subr.bf16.mxu0 0
    %1201 = vmatpush1.bf16.msra.mxu0 %v1185
    %1202 = vmatprep.subr.bf16.mxu0 0
    %1203 = vmatpush1.bf16.msra.mxu0 %v1184
    %1204 = vmatprep.subr.bf16.mxu0 0
    %1205 = vmatpush1.bf16.msra.mxu0 %v1183
    %1206 = vmatprep.subr.bf16.mxu0 0
    %1207 = vmatpush1.bf16.msra.mxu0 %v1182
    %1208 = vmatprep.subr.bf16.mxu0 0
    %1209 = vmatpush1.bf16.msra.mxu0 %v1181
    %1210 = vmatprep.subr.bf16.mxu0 0
    %1211 = vmatpush1.bf16.msra.mxu0 %v1180
    %1212 = vmatprep.subr.bf16.mxu0 0
    %1213 = vmatpush2.bf16.msra.mxu0 0
    %1214 = vmatprep.subr.bf16.mxu0 0
    %1215 = vmatpush2.bf16.msra.mxu0 0
    %1216 = vmatprep.subr.bf16.mxu0 0
    %1217 = vmatpush2.bf16.msra.mxu0 0
    %1218 = vmatprep.subr.bf16.mxu0 0
    %1219 = vmatpush2.bf16.msra.mxu0 0
    %1220 = vmatprep.subr.bf16.mxu0 0
    %1221 = vmatpush2.bf16.msra.mxu0 0
    %1222 = vmatprep.subr.bf16.mxu0 0
    %1223 = vmatpush2.bf16.msra.mxu0 0
    %1224 = vmatprep.subr.bf16.mxu0 0
    %1225 = vmatpush2.bf16.msra.mxu0 0
    %1226 = vmatprep.subr.bf16.mxu0 0
    %1227 = vmatpush2.bf16.msra.mxu0 0
    %1228 = vmatprep.mubr.bf16.mxu0 0
    %1229 = vmatmul.mubr.bf16.gmra.mxu0 %v1124
    %v1230 = vpop.f32.mrf.mxu0
    %v1231 = vadd.f32 %v1146, %v1230
    %v1232 = vpop.f32.mrf.mxu0
    %v1233 = vpop.f32.mrf.mxu0
    %v1234 = vpop.f32.mrf.mxu0
    %1235 = vdwg.mxu0
    %vm1236 = vcmp.gt.f32.partialorder %v1231, 0.0
    %v1237 = vmul.f32 %v1231, 0.01
    %v1238 = vsel %vm1236, %v1231, %v1237
    %v1239 = vpack.c.bf16 %v1238, %v1238
    %1240 = vst [vmem:[#allocation11] sm:$0xf] %v1239
    // Predicated region
    $region58: #{tpu_custom_call.1} parent=1 // pred_check
      _
    $region59: #{tpu_custom_call.1} parent=1 // pred_check_branch
      %1242 = sbr.rel (0) target = $region61
    $region60: #{tpu_custom_call.1} parent=1 // pred_region
      %s1244 = ssub.s32 64, 64
      %1245 = vsyncadd [#allocation4], %s1244
      %s1247 = sshll.u32 [#allocation11], 4
      %s1248 = int_to_ptr.vmem [resolvable:$true] %s1247
      %1250 = dma.vmem_to_hbm [thread:$0]  %s1248, 64, %s9, [#allocation4]
    $region61: #{tpu_custom_call.1} parent=1 // pred_fallthru
      _
    // Predicated region
    $region62: #{tpu_custom_call.1} parent=1 // pred_check
      _
    $region63: #{tpu_custom_call.1} parent=1 // pred_check_branch
      %1252 = sbr.rel (0) target = $region65
    $region64: #{tpu_custom_call.1} parent=1 // pred_region
      %1253 = dma.done [#allocation4], 64
    $region65: #{tpu_custom_call.1} parent=1 // pred_fallthru
      _
    %1254 = vsyncpa [#allocation3], 1
    %1255 = vsyncpa [#allocation6], 1
    %1256 = vsyncpa [#allocation9], 1
    %1257 = vsyncpa [#allocation4], 1

</llo_original>
